<compile_context>
chip_gen: v5e
topology: v5e:2x2
jax: 0.10.0
libtpu: 0.0.40
codegen_flags: <defaults>
</compile_context>

<pallas_src>
import jax
import jax.numpy as jnp
from jax.experimental import pallas as pl
from jax.experimental.pallas import tpu as pltpu


# ----------------------------------------------------------------------------
# Synthetic "function representation": a small coordinate MLP
#   coords(2) -> 16 -> 16 -> rgb(3)
# get_weight_shapes() returns PyTorch-convention (out, in) weight shapes and
# (out,) bias shapes, exactly what HyperNetwork._infer_output_shapes expects.
# ----------------------------------------------------------------------------
WEIGHT_SHAPES = [(16, 2), (16, 16), (3, 16)]
BIAS_SHAPES = [(16,), (16,), (3,)]

LATENT_DIM = 32
HYPERNET_LAYER_SIZES = (64, 64)
H1, H2 = HYPERNET_LAYER_SIZES


def infer_output_partition(weight_shapes, bias_shapes):
    num_layers = len(weight_shapes)
    output_dim = 0
    for i in range(num_layers):
        output_dim += weight_shapes[i][0] * weight_shapes[i][1]
        output_dim += bias_shapes[i][0]
    start = 0
    weight_partition = []
    for i in range(num_layers):
        wsize = weight_shapes[i][0] * weight_shapes[i][1]
        weight_partition.append((start, start + wsize))
        start += wsize
    bias_partition = []
    for i in range(num_layers):
        bsize = bias_shapes[i][0]
        bias_partition.append((start, start + bsize))
        start += bsize
    return output_dim, weight_partition, bias_partition


OUTPUT_DIM, WEIGHT_PARTITION, BIAS_PARTITION = infer_output_partition(
    WEIGHT_SHAPES, BIAS_SHAPES
)


def _cdiv(a, b):
    return -(-a // b)


def _round_up(x, m):
    return _cdiv(x, m) * m


# Lane-dense padded output width (371 -> 384).
OUT_PAD = _round_up(OUTPUT_DIM, 128)


# ----------------------------------------------------------------------------
# Pallas kernel: 3-layer MLP (Linear -> LeakyReLU(0.1) -> Linear ->
# LeakyReLU(0.1) -> Linear), one batch tile per grid step. bf16 inputs /
# weights, f32 accumulation + bias, bf16 store.
# ----------------------------------------------------------------------------
def _leaky_relu(x, slope=0.1):  # matches nn.LeakyReLU(0.1) in the module
    return jnp.where(x > 0, x, slope * x)


def hypernet_mlp_kernel(x_ref, w1_ref, b1_ref, w2_ref, b2_ref, w3_ref, b3_ref,
                        out_ref):
    h = jnp.dot(x_ref[...], w1_ref[...],
                preferred_element_type=jnp.float32) + b1_ref[...]
    h = _leaky_relu(h)
    h = jnp.dot(h.astype(jnp.bfloat16), w2_ref[...],
                preferred_element_type=jnp.float32) + b2_ref[...]
    h = _leaky_relu(h)
    out = jnp.dot(h.astype(jnp.bfloat16), w3_ref[...],
                  preferred_element_type=jnp.float32) + b3_ref[...]
    out_ref[...] = out.astype(out_ref.dtype)


def prepare_params(params):
    """Pad the last layer to OUT_PAD lanes and cast weights to bf16 (once,
    outside the kernel). Biases stay f32 (added to the f32 accumulator)."""
    pad = OUT_PAD - OUTPUT_DIM
    return {
        "w1": params["w1"].astype(jnp.bfloat16),
        "b1": params["b1"].astype(jnp.float32),
        "w2": params["w2"].astype(jnp.bfloat16),
        "b2": params["b2"].astype(jnp.float32),
        "w3": jnp.pad(params["w3"], ((0, 0), (0, pad))).astype(jnp.bfloat16),
        "b3": jnp.pad(params["b3"], ((0, 0), (0, pad))).astype(jnp.float32),
    }


def _choose_batch_tile(batch, block_batch):
    """Balance the batch across grid steps: pad waste < 8 rows, and keep the
    grid >= 2 steps for large batches so both v7x TensorCores get work."""
    num_steps = max(1, _cdiv(batch, block_batch))
    if num_steps == 1 and batch >= 16:
        num_steps = 2
    tb = _round_up(_cdiv(batch, num_steps), 8)
    padded_batch = _round_up(batch, tb)
    return tb, padded_batch


def hypernet_forward_layers(latents, prep_params, *, block_batch=1024,
                            out_dtype=jnp.bfloat16):
    """Run the hypernetwork MLP inside a single Pallas kernel.

    latents:     (batch, LATENT_DIM) float
    prep_params: output of prepare_params() (bf16 weights, padded last layer).
    Returns:     (padded_batch, OUT_PAD) `out_dtype` array. Rows >= batch and
                 lanes >= OUTPUT_DIM are zero padding; consumers slice the
                 partitions they need directly (no extra HBM round-trip).
    """
    batch = latents.shape[0]
    tb, padded_batch = _choose_batch_tile(batch, block_batch)

    # Cast + pad the input once, outside the kernel (bf16 halves the input DMA).
    latents = latents.astype(jnp.bfloat16)
    if padded_batch != batch:
        latents = jnp.pad(latents, ((0, padded_batch - batch), (0, 0)))
    grid = (padded_batch // tb,)

    out_bytes = jnp.dtype(out_dtype).itemsize
    weight_bytes = (LATENT_DIM * H1 + H1 * H2 + H2 * OUT_PAD) * 2 \
        + (H1 + H2 + OUT_PAD) * 4
    cost = pl.CostEstimate(
        flops=2 * padded_batch * (LATENT_DIM * H1 + H1 * H2 + H2 * OUT_PAD),
        transcendentals=0,
        bytes_accessed=padded_batch * (LATENT_DIM * 2 + OUT_PAD * out_bytes)
        + weight_bytes,
    )

    out = pl.pallas_call(
        hypernet_mlp_kernel,
        out_shape=jax.ShapeDtypeStruct((padded_batch, OUT_PAD), out_dtype),
        grid_spec=pltpu.PrefetchScalarGridSpec(
            num_scalar_prefetch=0,
            grid=grid,
            in_specs=[
                pl.BlockSpec((tb, LATENT_DIM), lambda i: (i, 0)),
                # Weights/biases: constant index_map -> DMA'd once, stay resident.
                pl.BlockSpec((LATENT_DIM, H1), lambda i: (0, 0)),
                pl.BlockSpec((1, H1), lambda i: (0, 0)),
                pl.BlockSpec((H1, H2), lambda i: (0, 0)),
                pl.BlockSpec((1, H2), lambda i: (0, 0)),
                pl.BlockSpec((H2, OUT_PAD), lambda i: (0, 0)),
                pl.BlockSpec((1, OUT_PAD), lambda i: (0, 0)),
            ],
            out_specs=pl.BlockSpec((tb, OUT_PAD), lambda i: (i, 0)),
        ),
        compiler_params=pltpu.CompilerParams(
            dimension_semantics=("parallel",),  # uses both TCs on v7x
        ),
        cost_estimate=cost,
    )(
        latents,
        prep_params["w1"], prep_params["b1"],
        prep_params["w2"], prep_params["b2"],
        prep_params["w3"], prep_params["b3"],
    )
    # NOTE: intentionally NOT sliced here -- returning the padded array lets
    # output_to_weights gather each partition in a single fused pass.
    return out


def output_to_weights(output, batch):
    """Vectorized glue: partition the (possibly padded) hypernet output into
    batched weight / bias arrays for the function representation.

    Returns (weights, biases) where weights[j] has shape
    (batch, *WEIGHT_SHAPES[j]) and biases[j] has shape (batch, *BIAS_SHAPES[j]).
    Same values / row-major reshape as the per-example PyTorch dicts, just
    batched. Batch padding and lane padding are stripped by these slices
    (every partition ends at <= OUTPUT_DIM, so pad lanes never matter).
    """
    weights = [
        output[:batch, s:e].reshape(batch, *WEIGHT_SHAPES[j])
        for j, (s, e) in enumerate(WEIGHT_PARTITION)
    ]
    biases = [
        output[:batch, s:e].reshape(batch, *BIAS_SHAPES[j])
        for j, (s, e) in enumerate(BIAS_PARTITION)
    ]
    return weights, biases


def hypernetwork_forward(latents, prep_params):
    output = hypernet_forward_layers(latents, prep_params)
    return output_to_weights(output, latents.shape[0])


# ----------------------------------------------------------------------------
# Deterministic parameter init (PyTorch nn.Linear-style uniform bounds),
# stored as (in, out) + (1, out) in fp32.
# ----------------------------------------------------------------------------
def init_params(key):
    dims = [LATENT_DIM, *HYPERNET_LAYER_SIZES, OUTPUT_DIM]
    params = {}
    for idx in range(3):
        fan_in, fan_out = dims[idx], dims[idx + 1]
        key, kw, kb = jax.random.split(key, 3)
        bound = 1.0 / (fan_in ** 0.5)
        params[f"w{idx + 1}"] = jax.random.uniform(
            kw, (fan_in, fan_out), jnp.float32, -bound, bound)
        params[f"b{idx + 1}"] = jax.random.uniform(
            kb, (1, fan_out), jnp.float32, -bound, bound)
    return params


def _reference_forward(latents, prep):
    """Pure-JAX reference using the same bf16 weight / activation casts."""
    x = latents.astype(jnp.bfloat16)
    h = jnp.dot(x, prep["w1"], preferred_element_type=jnp.float32) + prep["b1"]
    h = jnp.where(h > 0, h, 0.1 * h)
    h = jnp.dot(h.astype(jnp.bfloat16), prep["w2"],
                preferred_element_type=jnp.float32) + prep["b2"]
    h = jnp.where(h > 0, h, 0.1 * h)
    out = jnp.dot(h.astype(jnp.bfloat16), prep["w3"],
                  preferred_element_type=jnp.float32) + prep["b3"]
    return out[:, :OUTPUT_DIM]


if __name__ == "__main__":
    key = jax.random.PRNGKey(0)
    key, k_lat = jax.random.split(key)
    batch_size = 2
    latents = jax.random.normal(k_lat, (batch_size, LATENT_DIM), jnp.float32)
    params = init_params(key)
    prep = prepare_params(params)

    padded_out = hypernet_forward_layers(latents, prep)
    padded_out = jax.block_until_ready(padded_out)
    assert padded_out.shape[1] == OUT_PAD
    assert padded_out.shape[0] >= batch_size

    output = padded_out[:batch_size, :OUTPUT_DIM].astype(jnp.float32)
    assert output.shape == (batch_size, OUTPUT_DIM)

    # Sanity check vs. a pure-JAX reference with identical bf16 casts
    # (kernel stores bf16, so compare at bf16 precision).
    ref = _reference_forward(latents, prep).astype(jnp.float32)
    assert jnp.allclose(output, ref, atol=3e-2, rtol=3e-2), (
        float(jnp.max(jnp.abs(output - ref))))

    weights, biases = output_to_weights(padded_out, batch_size)
    jax.block_until_ready(weights[0])
    assert weights[0].shape == (batch_size, *WEIGHT_SHAPES[0])
    assert biases[-1].shape == (batch_size, *BIAS_SHAPES[-1])
    # Spot-check partition/reshape against the flat output (row-major view).
    s0, e0 = WEIGHT_PARTITION[0]
    assert jnp.array_equal(
        weights[0][0].reshape(-1).astype(jnp.float32), output[0, s0:e0])
    sb, eb = BIAS_PARTITION[-1]
    assert jnp.array_equal(
        biases[-1][1].reshape(-1).astype(jnp.float32), output[1, sb:eb])

    print("KERNEL_OK")
</pallas_src>

<mosaic_0001>
module attributes {stable_mosaic.version = 11 : i64} {
  func.func @hypernet_mlp_kernel(%arg0: i32, %arg1: memref<8x32xbf16, #tpu.memory_space<vmem>>, %arg2: memref<32x64xbf16, #tpu.memory_space<vmem>>, %arg3: memref<1x64xf32, #tpu.memory_space<vmem>>, %arg4: memref<64x64xbf16, #tpu.memory_space<vmem>>, %arg5: memref<1x64xf32, #tpu.memory_space<vmem>>, %arg6: memref<64x384xbf16, #tpu.memory_space<vmem>>, %arg7: memref<1x384xf32, #tpu.memory_space<vmem>>, %arg8: memref<8x384xbf16, #tpu.memory_space<vmem>>) attributes {dimension_semantics = [#tpu.dimension_semantics<parallel>], iteration_bounds = array<i64: 1>, scalar_prefetch = 0 : i64, scratch_operands = 0 : i64, tpu.core_type = #tpu.core_type<tc>, window_params = [{transform_indices = @transform_0, window_bounds = array<i64: 8, 32>}, {pipeline_mode = #tpu.pipeline_mode<synchronous>, transform_indices = @transform_1, window_bounds = array<i64: 32, 64>}, {pipeline_mode = #tpu.pipeline_mode<synchronous>, transform_indices = @transform_2, window_bounds = array<i64: 1, 64>}, {pipeline_mode = #tpu.pipeline_mode<synchronous>, transform_indices = @transform_3, window_bounds = array<i64: 64, 64>}, {pipeline_mode = #tpu.pipeline_mode<synchronous>, transform_indices = @transform_4, window_bounds = array<i64: 1, 64>}, {pipeline_mode = #tpu.pipeline_mode<synchronous>, transform_indices = @transform_5, window_bounds = array<i64: 64, 384>}, {pipeline_mode = #tpu.pipeline_mode<synchronous>, transform_indices = @transform_6, window_bounds = array<i64: 1, 384>}, {transform_indices = @transform_7, window_bounds = array<i64: 8, 384>}]} {
    %c0 = arith.constant 0 : index
    %c0_0 = arith.constant 0 : index
    %0 = vector.load %arg1[%c0, %c0_0] : memref<8x32xbf16, #tpu.memory_space<vmem>>, vector<8x32xbf16>
    %c0_1 = arith.constant 0 : index
    %c0_2 = arith.constant 0 : index
    %1 = vector.load %arg2[%c0_1, %c0_2] : memref<32x64xbf16, #tpu.memory_space<vmem>>, vector<32x64xbf16>
    %cst = arith.constant dense<0.000000e+00> : vector<8x64xf32>
    %2 = tpu.matmul %0, %1, %cst {dimension_numbers = #tpu.dot_dimension_numbers<[1], [0], [0], [1], [0, 0, 1, 1], [], []>} : vector<8x32xbf16>, vector<32x64xbf16>, vector<8x64xf32> -> vector<8x64xf32>
    %c0_3 = arith.constant 0 : index
    %c0_4 = arith.constant 0 : index
    %3 = vector.load %arg3[%c0_3, %c0_4] : memref<1x64xf32, #tpu.memory_space<vmem>>, vector<1x64xf32>
    %4 = vector.broadcast %3 : vector<1x64xf32> to vector<8x64xf32>
    %5 = arith.addf %2, %4 : vector<8x64xf32>
    %cst_5 = arith.constant 0.000000e+00 : f32
    %6 = vector.broadcast %cst_5 : f32 to vector<8x64xf32>
    %7 = arith.cmpf ogt, %5, %6 : vector<8x64xf32>
    %cst_6 = arith.constant 1.000000e-01 : f32
    %8 = vector.broadcast %cst_6 : f32 to vector<8x64xf32>
    %9 = arith.mulf %8, %5 : vector<8x64xf32>
    %10 = arith.select %7, %5, %9 : vector<8x64xi1>, vector<8x64xf32>
    %11 = arith.truncf %10 : vector<8x64xf32> to vector<8x64xbf16>
    %c0_7 = arith.constant 0 : index
    %c0_8 = arith.constant 0 : index
    %12 = vector.load %arg4[%c0_7, %c0_8] : memref<64x64xbf16, #tpu.memory_space<vmem>>, vector<64x64xbf16>
    %cst_9 = arith.constant dense<0.000000e+00> : vector<8x64xf32>
    %13 = tpu.matmul %11, %12, %cst_9 {dimension_numbers = #tpu.dot_dimension_numbers<[1], [0], [0], [1], [0, 0, 1, 1], [], []>} : vector<8x64xbf16>, vector<64x64xbf16>, vector<8x64xf32> -> vector<8x64xf32>
    %c0_10 = arith.constant 0 : index
    %c0_11 = arith.constant 0 : index
    %14 = vector.load %arg5[%c0_10, %c0_11] : memref<1x64xf32, #tpu.memory_space<vmem>>, vector<1x64xf32>
    %15 = vector.broadcast %14 : vector<1x64xf32> to vector<8x64xf32>
    %16 = arith.addf %13, %15 : vector<8x64xf32>
    %cst_12 = arith.constant 0.000000e+00 : f32
    %17 = vector.broadcast %cst_12 : f32 to vector<8x64xf32>
    %18 = arith.cmpf ogt, %16, %17 : vector<8x64xf32>
    %cst_13 = arith.constant 1.000000e-01 : f32
    %19 = vector.broadcast %cst_13 : f32 to vector<8x64xf32>
    %20 = arith.mulf %19, %16 : vector<8x64xf32>
    %21 = arith.select %18, %16, %20 : vector<8x64xi1>, vector<8x64xf32>
    %22 = arith.truncf %21 : vector<8x64xf32> to vector<8x64xbf16>
    %c0_14 = arith.constant 0 : index
    %c0_15 = arith.constant 0 : index
    %23 = vector.load %arg6[%c0_14, %c0_15] : memref<64x384xbf16, #tpu.memory_space<vmem>>, vector<64x384xbf16>
    %cst_16 = arith.constant dense<0.000000e+00> : vector<8x384xf32>
    %24 = tpu.matmul %22, %23, %cst_16 {dimension_numbers = #tpu.dot_dimension_numbers<[1], [0], [0], [1], [0, 0, 1, 1], [], []>} : vector<8x64xbf16>, vector<64x384xbf16>, vector<8x384xf32> -> vector<8x384xf32>
    %c0_17 = arith.constant 0 : index
    %c0_18 = arith.constant 0 : index
    %25 = vector.load %arg7[%c0_17, %c0_18] : memref<1x384xf32, #tpu.memory_space<vmem>>, vector<1x384xf32>
    %26 = vector.broadcast %25 : vector<1x384xf32> to vector<8x384xf32>
    %27 = arith.addf %24, %26 : vector<8x384xf32>
    %28 = arith.truncf %27 : vector<8x384xf32> to vector<8x384xbf16>
    %c0_19 = arith.constant 0 : index
    %c0_20 = arith.constant 0 : index
    %29 = vector.load %arg8[%c0_19, %c0_20] : memref<8x384xbf16, #tpu.memory_space<vmem>>, vector<8x384xbf16>
    tpu.vector_store %arg8[%c0_19, %c0_20], %28 {strides = array<i32>} : memref<8x384xbf16, #tpu.memory_space<vmem>>, vector<8x384xbf16>,
    return
  }
  func.func @transform_0(%arg0: i32) -> (i32, i32) {
    %c0_i32 = arith.constant 0 : i32
    %c0_i32_0 = arith.constant 0 : i32
    return %arg0, %c0_i32 : i32, i32
  }
  func.func @transform_1(%arg0: i32) -> (i32, i32) {
    %c0_i32 = arith.constant 0 : i32
    %c0_i32_0 = arith.constant 0 : i32
    %c0_i32_1 = arith.constant 0 : i32
    return %c0_i32, %c0_i32_0 : i32, i32
  }
  func.func @transform_2(%arg0: i32) -> (i32, i32) {
    %c0_i32 = arith.constant 0 : i32
    %c0_i32_0 = arith.constant 0 : i32
    %c0_i32_1 = arith.constant 0 : i32
    return %c0_i32, %c0_i32_0 : i32, i32
  }
  func.func @transform_3(%arg0: i32) -> (i32, i32) {
    %c0_i32 = arith.constant 0 : i32
    %c0_i32_0 = arith.constant 0 : i32
    %c0_i32_1 = arith.constant 0 : i32
    return %c0_i32, %c0_i32_0 : i32, i32
  }
  func.func @transform_4(%arg0: i32) -> (i32, i32) {
    %c0_i32 = arith.constant 0 : i32
    %c0_i32_0 = arith.constant 0 : i32
    %c0_i32_1 = arith.constant 0 : i32
    return %c0_i32, %c0_i32_0 : i32, i32
  }
  func.func @transform_5(%arg0: i32) -> (i32, i32) {
    %c0_i32 = arith.constant 0 : i32
    %c0_i32_0 = arith.constant 0 : i32
    %c0_i32_1 = arith.constant 0 : i32
    return %c0_i32, %c0_i32_0 : i32, i32
  }
  func.func @transform_6(%arg0: i32) -> (i32, i32) {
    %c0_i32 = arith.constant 0 : i32
    %c0_i32_0 = arith.constant 0 : i32
    %c0_i32_1 = arith.constant 0 : i32
    return %c0_i32, %c0_i32_0 : i32, i32
  }
  func.func @transform_7(%arg0: i32) -> (i32, i32) {
    %c0_i32 = arith.constant 0 : i32
    %c0_i32_0 = arith.constant 0 : i32
    return %arg0, %c0_i32 : i32, i32
  }
}

</mosaic_0001>

<llo_original>
// kernel: tpu_custom_call.1
$region0: #{tpu_custom_call.1}
  #allocation0 [shape = 'u32[]', space=smem, size = 0x4, offset = 0x4, fixed_abs, tag = 'smem constant byte address 0x4 - core index']
  #allocation1 [shape = 'u32[72,128]{1,0:T(1,128)}', space=vmem, size = 0x9000, scoped, tag = 'internal scratch']
  %s0 = inlined_call_operand.hbm [shape: bf16[8,32], index: 0, kind: input, shape index: {}]
  %s1 = inlined_call_operand.hbm [shape: bf16[32,64], index: 1, kind: input, shape index: {}]
  %s2 = inlined_call_operand.vmem [shape: f32[1,64], index: 2, kind: input, shape index: {}]
  %s3 = inlined_call_operand.hbm [shape: bf16[64,64], index: 3, kind: input, shape index: {}]
  %s4 = inlined_call_operand.vmem [shape: f32[1,64], index: 4, kind: input, shape index: {}]
  %s5 = inlined_call_operand.hbm [shape: bf16[64,384], index: 5, kind: input, shape index: {}]
  %s6 = inlined_call_operand.vmem [shape: f32[1,384], index: 6, kind: input, shape index: {}]
  %s7 = inlined_call_operand.hbm [shape: bf16[8,384], index: 7, kind: output, shape index: {}]
  %s8 = sld [smem:[#allocation0]]
  $region54: #{tpu_custom_call.1} parent=0
    _
  %s10 = ssub.s32 1, %s8
  %s11 = scalar_select 0, %s10, %s8
  $region1: #{tpu_custom_call.1} parent=0
    #allocation2 [shape = 'u8[2048]{0}', space=vmem, size = 0x800, scoped, tag = 'input window, operand 0, single buffered']
    #allocation3 [shape = 's32[1]{0}', space=sflag, size = 0x4, scoped, tag = 'scoped memory for tpu_custom_call.1']
    #allocation4 [shape = 's32[1]{0}', space=sflag, size = 0x4, scoped, tag = 'scoped memory for tpu_custom_call.1']
    #allocation5 [shape = 'u8[8192]{0}', space=vmem, size = 0x2000, scoped, tag = 'input window, operand 1, single buffered']
    #allocation6 [shape = 's32[1]{0}', space=sflag, size = 0x4, scoped, tag = 'scoped memory for tpu_custom_call.1']
    #allocation7 [shape = 'u8[16384]{0}', space=vmem, size = 0x4000, scoped, tag = 'input window, operand 3, single buffered']
    #allocation8 [shape = 'u8[49152]{0}', space=vmem, size = 0xc000, scoped, tag = 'input window, operand 5, single buffered']
    #allocation9 [shape = 's32[1]{0}', space=sflag, size = 0x4, scoped, tag = 'scoped memory for tpu_custom_call.1']
    #allocation10 [shape = 'u8[6144]{0}', space=vmem, size = 0x1800, scoped, tag = 'output window, operand 0, single buffered']
    %12 = vsyncpa [#allocation3], 0
    %13 = vsyncpa [#allocation6], 0
    %14 = vsyncpa [#allocation9], 0
    %15 = vsyncpa [#allocation4], 0
    // Predicated region
    $region2: #{tpu_custom_call.1} parent=1 // pred_check
      _
    $region3: #{tpu_custom_call.1} parent=1 // pred_check_branch
      %17 = sbr.rel (0) target = $region5
    $region4: #{tpu_custom_call.1} parent=1 // pred_region
      %19 = vsyncadd [#allocation3], 0
      %s21 = sshll.u32 %s0, 4
      %s22 = int_to_ptr.hbm [resolvable:$true] %s21
      %s23 = sshll.u32 [#allocation2], 4
      %s24 = int_to_ptr.vmem [resolvable:$true] %s23
      %26 = dma.hbm_to_vmem [thread:$0]  %s22, 64, %s24, [#allocation3]
    $region5: #{tpu_custom_call.1} parent=1 // pred_fallthru
      _
    // Predicated region
    $region6: #{tpu_custom_call.1} parent=1 // pred_check
      _
    $region7: #{tpu_custom_call.1} parent=1 // pred_check_branch
      %28 = sbr.rel (0) target = $region9
    $region8: #{tpu_custom_call.1} parent=1 // pred_region
      %30 = vsyncadd [#allocation6], 0
      %s31 = sshll.u32 %s1, 4
      %s32 = int_to_ptr.hbm [resolvable:$true] %s31
      %s33 = sshll.u32 [#allocation5], 4
      %s34 = int_to_ptr.vmem [resolvable:$true] %s33
      %39 = dma.hbm_to_vmem [thread:$0]  %s32, 256, %s34, [#allocation6], 64, 64, 4
    $region9: #{tpu_custom_call.1} parent=1 // pred_fallthru
      _
    // Predicated region
    $region10: #{tpu_custom_call.1} parent=1 // pred_check
      _
    $region11: #{tpu_custom_call.1} parent=1 // pred_check_branch
      %41 = sbr.rel (0) target = $region13
    $region12: #{tpu_custom_call.1} parent=1 // pred_region
      _
    $region13: #{tpu_custom_call.1} parent=1 // pred_fallthru
      _
    // Predicated region
    $region14: #{tpu_custom_call.1} parent=1 // pred_check
      _
    $region15: #{tpu_custom_call.1} parent=1 // pred_check_branch
      %43 = sbr.rel (0) target = $region17
    $region16: #{tpu_custom_call.1} parent=1 // pred_region
      %45 = vsyncadd [#allocation6], 0
      %s46 = sshll.u32 %s3, 4
      %s47 = int_to_ptr.hbm [resolvable:$true] %s46
      %s48 = sshll.u32 [#allocation7], 4
      %s49 = int_to_ptr.vmem [resolvable:$true] %s48
      %54 = dma.hbm_to_vmem [thread:$0]  %s47, 512, %s49, [#allocation6], 64, 64, 4
    $region17: #{tpu_custom_call.1} parent=1 // pred_fallthru
      _
    // Predicated region
    $region18: #{tpu_custom_call.1} parent=1 // pred_check
      _
    $region19: #{tpu_custom_call.1} parent=1 // pred_check_branch
      %56 = sbr.rel (0) target = $region21
    $region20: #{tpu_custom_call.1} parent=1 // pred_region
      _
    $region21: #{tpu_custom_call.1} parent=1 // pred_fallthru
      _
    // Predicated region
    $region22: #{tpu_custom_call.1} parent=1 // pred_check
      _
    $region23: #{tpu_custom_call.1} parent=1 // pred_check_branch
      %58 = sbr.rel (0) target = $region25
    $region24: #{tpu_custom_call.1} parent=1 // pred_region
      %60 = vsyncadd [#allocation9], 0
      %s61 = sshll.u32 %s5, 4
      %s62 = int_to_ptr.hbm [resolvable:$true] %s61
      %s63 = sshll.u32 [#allocation8], 4
      %s64 = int_to_ptr.vmem [resolvable:$true] %s63
      %69 = dma.hbm_to_vmem [thread:$0]  %s62, 1536, %s64, [#allocation9], 192, 192, 12
    $region25: #{tpu_custom_call.1} parent=1 // pred_fallthru
      _
    // Predicated region
    $region26: #{tpu_custom_call.1} parent=1 // pred_check
      _
    $region27: #{tpu_custom_call.1} parent=1 // pred_check_branch
      %71 = sbr.rel (0) target = $region29
    $region28: #{tpu_custom_call.1} parent=1 // pred_region
      _
    $region29: #{tpu_custom_call.1} parent=1 // pred_fallthru
      _
    // Predicated region
    $region30: #{tpu_custom_call.1} parent=1 // pred_check
      _
    $region31: #{tpu_custom_call.1} parent=1 // pred_check_branch
      %73 = sbr.rel (0) target = $region33
    $region32: #{tpu_custom_call.1} parent=1 // pred_region
      %75 = dma.done [#allocation3], 64
    $region33: #{tpu_custom_call.1} parent=1 // pred_fallthru
      _
    // Predicated region
    $region34: #{tpu_custom_call.1} parent=1 // pred_check
      _
    $region35: #{tpu_custom_call.1} parent=1 // pred_check_branch
      %77 = sbr.rel (0) target = $region37
    $region36: #{tpu_custom_call.1} parent=1 // pred_region
      %79 = dma.done [#allocation6], 256
    $region37: #{tpu_custom_call.1} parent=1 // pred_fallthru
      _
    // Predicated region
    $region38: #{tpu_custom_call.1} parent=1 // pred_check
      _
    $region39: #{tpu_custom_call.1} parent=1 // pred_check_branch
      %81 = sbr.rel (0) target = $region41
    $region40: #{tpu_custom_call.1} parent=1 // pred_region
      %83 = dma.done [#allocation6], 512
    $region41: #{tpu_custom_call.1} parent=1 // pred_fallthru
      _
    // Predicated region
    $region42: #{tpu_custom_call.1} parent=1 // pred_check
      _
    $region43: #{tpu_custom_call.1} parent=1 // pred_check_branch
      %85 = sbr.rel (0) target = $region45
    $region44: #{tpu_custom_call.1} parent=1 // pred_region
      %87 = dma.done [#allocation9], 1536
    $region45: #{tpu_custom_call.1} parent=1 // pred_fallthru
      _
    %v89 = vld [vmem:[#allocation2] sm:$0xf]
    %v90 = vld [vmem:[#allocation5] sm:$0xf]
    %v91 = vld [vmem:[#allocation5 + $0x4] sm:$0xf]
    %v92 = vld [vmem:[#allocation5 + $0x8] sm:$0xf]
    %v93 = vld [vmem:[#allocation5 + $0xc] sm:$0xf]
    %v94 = vld [vmem:[%s2] sm:$0x1]
    %v96 = vperm.slane %v94, 0
    %v102 = vunpack.c.l.b16 %v90
    %v103 = vunpack.c.l.b16 %v91
    %v104 = vunpack.c.l.b16 %v92
    %v105 = vunpack.c.l.b16 %v93
    %v106 = vpack.c.b16 %v103, %v102
    %v107 = vpack.c.b16 %v105, %v104
    %vm110 = vcmask 261120
    %v112 = vsel %vm110, %v89, 0
    %114 = vmatpush.bf16.msra.mxu0 0
    %115 = vmatpush.bf16.msra.mxu0 0
    %116 = vmatpush.bf16.msra.mxu0 0
    %117 = vmatpush.bf16.msra.mxu0 0
    %118 = vmatpush.bf16.msra.mxu0 0
    %119 = vmatpush.bf16.msra.mxu0 0
    %120 = vmatpush.bf16.msra.mxu0 %v107
    %121 = vmatpush.bf16.msra.mxu0 %v106
    %122 = vmatmul.bf16.gmra.mxu0 %v112
    %v123 = vpop.f32.mrf.mxu0
    %v124 = vadd.f32 %v96, %v123
    %v125 = vpop.f32.mrf.mxu0
    %126 = vdwg.mxu0
    %vm127 = vcmp.gt.f32.partialorder %v124, 0.0
    %v128 = vmul.f32 %v124, 0.1
    %v129 = vsel %vm127, %v124, %v128
    %v130 = vpack.c.bf16 %v129, %v129
    %v131 = vld [vmem:[#allocation7] sm:$0xf]
    %v132 = vld [vmem:[#allocation7 + $0x4] sm:$0xf]
    %v133 = vld [vmem:[#allocation7 + $0x8] sm:$0xf]
    %v134 = vld [vmem:[#allocation7 + $0xc] sm:$0xf]
    %v135 = vld [vmem:[#allocation7 + $0x10] sm:$0xf]
    %v136 = vld [vmem:[#allocation7 + $0x14] sm:$0xf]
    %v137 = vld [vmem:[#allocation7 + $0x18] sm:$0xf]
    %v138 = vld [vmem:[#allocation7 + $0x1c] sm:$0xf]
    %v139 = vld [vmem:[%s4] sm:$0x1]
    %v141 = vperm.slane %v139, 0
    %v151 = vunpack.c.l.b16 %v131
    %v152 = vunpack.c.l.b16 %v132
    %v153 = vunpack.c.l.b16 %v133
    %v154 = vunpack.c.l.b16 %v134
    %v155 = vunpack.c.l.b16 %v135
    %v156 = vunpack.c.l.b16 %v136
    %v157 = vunpack.c.l.b16 %v137
    %v158 = vunpack.c.l.b16 %v138
    %v159 = vpack.c.b16 %v152, %v151
    %v160 = vpack.c.b16 %v154, %v153
    %v161 = vpack.c.b16 %v156, %v155
    %v162 = vpack.c.b16 %v158, %v157
    %vm167 = vcmask 523264
    %v169 = vsel %vm167, %v130, 0
    %171 = vmatpush.bf16.msra.mxu0 0
    %172 = vmatpush.bf16.msra.mxu0 0
    %173 = vmatpush.bf16.msra.mxu0 0
    %174 = vmatpush.bf16.msra.mxu0 0
    %175 = vmatpush.bf16.msra.mxu0 %v162
    %176 = vmatpush.bf16.msra.mxu0 %v161
    %177 = vmatpush.bf16.msra.mxu0 %v160
    %178 = vmatpush.bf16.msra.mxu0 %v159
    %179 = vmatmul.bf16.gmra.mxu0 %v169
    %v180 = vpop.f32.mrf.mxu0
    %v181 = vadd.f32 %v141, %v180
    %v182 = vpop.f32.mrf.mxu0
    %183 = vdwg.mxu0
    %vm184 = vcmp.gt.f32.partialorder %v181, 0.0
    %v185 = vmul.f32 %v181, 0.1
    %v186 = vsel %vm184, %v181, %v185
    %v187 = vpack.c.bf16 %v186, %v186
    %v188 = vld [vmem:[#allocation8] sm:$0xff]
    %v189 = vld [vmem:[#allocation8 + $0x8] sm:$0xf]
    %v190 = vld [vmem:[#allocation8 + $0xc] sm:$0xff]
    %v191 = vld [vmem:[#allocation8 + $0x14] sm:$0xf]
    %v192 = vld [vmem:[#allocation8 + $0x18] sm:$0xff]
    %v193 = vld [vmem:[#allocation8 + $0x20] sm:$0xf]
    %v194 = vld [vmem:[#allocation8 + $0x24] sm:$0xff]
    %v195 = vld [vmem:[#allocation8 + $0x2c] sm:$0xf]
    %v196 = vld [vmem:[#allocation8 + $0x30] sm:$0xff]
    %v197 = vld [vmem:[#allocation8 + $0x38] sm:$0xf]
    %v198 = vld [vmem:[#allocation8 + $0x3c] sm:$0xff]
    %v199 = vld [vmem:[#allocation8 + $0x44] sm:$0xf]
    %v200 = vld [vmem:[#allocation8 + $0x48] sm:$0xff]
    %v201 = vld [vmem:[#allocation8 + $0x50] sm:$0xf]
    %v202 = vld [vmem:[#allocation8 + $0x54] sm:$0xff]
    %v203 = vld [vmem:[#allocation8 + $0x5c] sm:$0xf]
    %v204 = vld [vmem:[%s6] sm:$0x7]
    %v206 = vperm.slane %v204, 0
    %v207 = vperm.slane %v204, 1
    %v208 = vperm.slane %v204, 2
    %v228 = vunpack.c.l.b16 %v188
    %v229 = vunpack.c.h.b16 %v188
    %v230 = vunpack.c.l.b16 %v189
    %v231 = vunpack.c.l.b16 %v190
    %v232 = vunpack.c.h.b16 %v190
    %v233 = vunpack.c.l.b16 %v191
    %v234 = vunpack.c.l.b16 %v192
    %v235 = vunpack.c.h.b16 %v192
    %v236 = vunpack.c.l.b16 %v193
    %v237 = vunpack.c.l.b16 %v194
    %v238 = vunpack.c.h.b16 %v194
    %v239 = vunpack.c.l.b16 %v195
    %v240 = vunpack.c.l.b16 %v196
    %v241 = vunpack.c.h.b16 %v196
    %v242 = vunpack.c.l.b16 %v197
    %v243 = vunpack.c.l.b16 %v198
    %v244 = vunpack.c.h.b16 %v198
    %v245 = vunpack.c.l.b16 %v199
    %v246 = vunpack.c.l.b16 %v200
    %v247 = vunpack.c.h.b16 %v200
    %v248 = vunpack.c.l.b16 %v201
    %v249 = vunpack.c.l.b16 %v202
    %v250 = vunpack.c.h.b16 %v202
    %v251 = vunpack.c.l.b16 %v203
    %v252 = vpack.c.b16 %v231, %v228
    %v253 = vpack.c.b16 %v232, %v229
    %v254 = vpack.c.b16 %v233, %v230
    %v255 = vpack.c.b16 %v237, %v234
    %v256 = vpack.c.b16 %v238, %v235
    %v257 = vpack.c.b16 %v239, %v236
    %v258 = vpack.c.b16 %v243, %v240
    %v259 = vpack.c.b16 %v244, %v241
    %v260 = vpack.c.b16 %v245, %v242
    %v261 = vpack.c.b16 %v249, %v246
    %v262 = vpack.c.b16 %v250, %v247
    %v263 = vpack.c.b16 %v251, %v248
    %v277 = vsel %vm167, %v187, 0
    %279 = vmatpush.bf16.msra.mxu0 0
    %280 = vmatpush.bf16.msra.mxu0 0
    %281 = vmatpush.bf16.msra.mxu0 0
    %282 = vmatpush.bf16.msra.mxu0 0
    %283 = vmatpush.bf16.msra.mxu0 %v261
    %284 = vmatpush.bf16.msra.mxu0 %v258
    %285 = vmatpush.bf16.msra.mxu0 %v255
    %286 = vmatpush.bf16.msra.mxu0 %v252
    %287 = vmatmul.bf16.gmra.mxu0 %v277
    %v288 = vpop.f32.mrf.mxu0
    %v289 = vadd.f32 %v206, %v288
    %v290 = vpop.f32.mrf.mxu0
    %291 = vdwg.mxu0
    %292 = vmatpush.bf16.msra.mxu0 0
    %293 = vmatpush.bf16.msra.mxu0 0
    %294 = vmatpush.bf16.msra.mxu0 0
    %295 = vmatpush.bf16.msra.mxu0 0
    %296 = vmatpush.bf16.msra.mxu0 %v262
    %297 = vmatpush.bf16.msra.mxu0 %v259
    %298 = vmatpush.bf16.msra.mxu0 %v256
    %299 = vmatpush.bf16.msra.mxu0 %v253
    %300 = vmatmul.bf16.gmra.mxu0 %v277
    %v301 = vpop.f32.mrf.mxu0
    %v302 = vadd.f32 %v207, %v301
    %v303 = vpop.f32.mrf.mxu0
    %304 = vdwg.mxu0
    %305 = vmatpush.bf16.msra.mxu0 0
    %306 = vmatpush.bf16.msra.mxu0 0
    %307 = vmatpush.bf16.msra.mxu0 0
    %308 = vmatpush.bf16.msra.mxu0 0
    %309 = vmatpush.bf16.msra.mxu0 %v263
    %310 = vmatpush.bf16.msra.mxu0 %v260
    %311 = vmatpush.bf16.msra.mxu0 %v257
    %312 = vmatpush.bf16.msra.mxu0 %v254
    %313 = vmatmul.bf16.gmra.mxu0 %v277
    %v314 = vpop.f32.mrf.mxu0
    %v315 = vadd.f32 %v208, %v314
    %v316 = vpop.f32.mrf.mxu0
    %317 = vdwg.mxu0
    %v318 = vpack.c.bf16 %v302, %v289
    %v319 = vpack.c.bf16 %v315, %v315
    %320 = vst [vmem:[#allocation10] sm:$0xff] %v318
    %321 = vst [vmem:[#allocation10 + $0x8] sm:$0xf] %v319
    // Predicated region
    $region46: #{tpu_custom_call.1} parent=1 // pred_check
      _
    $region47: #{tpu_custom_call.1} parent=1 // pred_check_branch
      %323 = sbr.rel (0) target = $region49
    $region48: #{tpu_custom_call.1} parent=1 // pred_region
      %325 = vsyncadd [#allocation4], 0
      %s327 = sshll.u32 [#allocation10], 4
      %s328 = int_to_ptr.vmem [resolvable:$true] %s327
      %s329 = sshll.u32 %s7, 4
      %s330 = int_to_ptr.hbm [resolvable:$true] %s329
      %332 = dma.vmem_to_hbm [thread:$0]  %s328, 192, %s330, [#allocation4]
    $region49: #{tpu_custom_call.1} parent=1 // pred_fallthru
      _
    // Predicated region
    $region50: #{tpu_custom_call.1} parent=1 // pred_check
      _
    $region51: #{tpu_custom_call.1} parent=1 // pred_check_branch
      %334 = sbr.rel (0) target = $region53
    $region52: #{tpu_custom_call.1} parent=1 // pred_region
      %336 = dma.done [#allocation4], 192
    $region53: #{tpu_custom_call.1} parent=1 // pred_fallthru
      _
    %337 = vsyncpa [#allocation3], 1
    %338 = vsyncpa [#allocation6], 1
    %339 = vsyncpa [#allocation9], 1
    %340 = vsyncpa [#allocation4], 1

</llo_original>
